<compile_context>
chip_gen: v5e
topology: v5e:2x2
jax: 0.10.0
libtpu: 0.0.40
codegen_flags: <defaults>
</compile_context>

<pallas_src>
import jax
import jax.numpy as jnp
from jax import lax
from jax.experimental import pallas as pl
from jax.experimental.pallas import tpu as pltpu


def _image_proj_kernel(x_ref, wq_ref, wk_ref, wv_ref, bq_ref, bk_ref, bv_ref,
                       gamma_ref, o_ref):
    # x_ref block: (Bt, N, C); weights pre-transposed/padded in the wrapper:
    #   wq_ref/wk_ref: (C, Ckp) bf16, wv_ref: (C, C) bf16, biases f32.
    Bt, N, C = x_ref.shape
    Ckp = wq_ref.shape[1]

    x_f32 = x_ref[...].astype(jnp.float32)            # exact residual path
    x2d = x_f32.astype(jnp.bfloat16).reshape(Bt * N, C)  # fill MXU rows

    # 1x1-Conv1d projections == channel matmuls (bf16 in, f32 accumulate).
    q = jnp.dot(x2d, wq_ref[...], preferred_element_type=jnp.float32) + bq_ref[...]
    k = jnp.dot(x2d, wk_ref[...], preferred_element_type=jnp.float32) + bk_ref[...]
    v = jnp.dot(x2d, wv_ref[...], preferred_element_type=jnp.float32) + bv_ref[...]

    q3 = q.reshape(Bt, N, Ckp)
    k3 = k.reshape(Bt, N, Ckp)
    v3 = v.reshape(Bt, N, C)

    # energy[b] = q[b] @ k[b]^T without materializing a transpose: contract the
    # last dim of both operands, batch over dim 0.
    energy = lax.dot_general(
        q3, k3,
        dimension_numbers=(((2,), (2,)), ((0,), (0,))),
        preferred_element_type=jnp.float32)            # (Bt, N, N)

    # softmax over the last dim (numerically stabilized); EUP reciprocal.
    e_max = jnp.max(energy, axis=-1, keepdims=True)
    p = jnp.exp(energy - e_max)
    denom = jnp.sum(p, axis=-1, keepdims=True)
    attn = p * pl.reciprocal(denom, approx=True)

    # out[b] = attn[b] @ v[b]  (bf16 MXU inputs, f32 accumulation).
    out = lax.dot_general(
        attn.astype(jnp.bfloat16), v3.astype(jnp.bfloat16),
        dimension_numbers=(((2,), (1,)), ((0,), (0,))),
        preferred_element_type=jnp.float32)            # (Bt, N, C)

    gamma = gamma_ref[0]                               # scalar from SMEM
    o_ref[...] = (gamma * out + x_f32).astype(o_ref.dtype)


def _pick_block_batches(B, N, target_rows=256):
    """Largest Bt that (a) divides B, (b) keeps Bt*N <= target_rows (MXU row
    fill without oversized tiles), and (c) leaves a grid of length >= 2 so
    both v7x TensorCores get work."""
    if B <= 1:
        return 1
    best = 1
    for bt in range(1, B // 2 + 1):
        if B % bt == 0 and bt * N <= max(target_rows, N):
            best = bt
    return best


def image_proj_forward(images, params, *, target_rows=256):
    """images: (B, N, C) float32. Returns (B, N, C)."""
    B, N, C = images.shape
    Ck = params["wq"].shape[0]
    Ckp = ((Ck + 127) // 128) * 128   # lane-pad the C//8 axis (zeros -> no-op)

    def prep_qk(w, b):
        wt = w.T.astype(jnp.bfloat16)                          # (C, Ck)
        wt = jnp.pad(wt, ((0, 0), (0, Ckp - Ck)))              # (C, Ckp)
        bb = jnp.pad(b.astype(jnp.float32), (0, Ckp - Ck)).reshape(1, Ckp)
        return wt, bb

    wq_t, bq = prep_qk(params["wq"], params["bq"])
    wk_t, bk = prep_qk(params["wk"], params["bk"])
    wv_t = params["wv"].T.astype(jnp.bfloat16)                 # (C, C)
    bv = params["bv"].astype(jnp.float32).reshape(1, C)
    gamma = params["gamma"].astype(jnp.float32).reshape(1)

    Bt = _pick_block_batches(B, N, target_rows)
    grid = (B // Bt,)

    return pl.pallas_call(
        _image_proj_kernel,
        out_shape=jax.ShapeDtypeStruct((B, N, C), images.dtype),
        grid_spec=pltpu.PrefetchScalarGridSpec(
            num_scalar_prefetch=0,
            grid=grid,
            in_specs=[
                pl.BlockSpec((Bt, N, C), lambda b: (b, 0, 0)),   # x
                pl.BlockSpec((C, Ckp), lambda b: (0, 0)),        # Wq^T (bf16)
                pl.BlockSpec((C, Ckp), lambda b: (0, 0)),        # Wk^T (bf16)
                pl.BlockSpec((C, C), lambda b: (0, 0)),          # Wv^T (bf16)
                pl.BlockSpec((1, Ckp), lambda b: (0, 0)),        # bq (padded)
                pl.BlockSpec((1, Ckp), lambda b: (0, 0)),        # bk (padded)
                pl.BlockSpec((1, C), lambda b: (0, 0)),          # bv
                pl.BlockSpec(memory_space=pltpu.MemorySpace.SMEM),  # gamma
            ],
            out_specs=pl.BlockSpec((Bt, N, C), lambda b: (b, 0, 0)),
        ),
        compiler_params=pltpu.CompilerParams(
            dimension_semantics=("parallel",),
            # Explicit budget so large-C configs (e.g. C=2048 lavse features)
            # don't trip the 16/32 MiB default scoped VMEM limits; bf16 weights
            # halve their footprint relative to f32.
            vmem_limit_bytes=64 * 1024 * 1024,
        ),
    )(images, wq_t, wk_t, wv_t, bq, bk, bv, gamma)


def _reference_forward(images, params):
    """Pure-JAX f32 reference mirroring the PyTorch forward (NCW folded)."""
    x = images.astype(jnp.float32)
    q = jnp.einsum("bnc,oc->bno", x, params["wq"]) + params["bq"]
    k = jnp.einsum("bnc,oc->bno", x, params["wk"]) + params["bk"]
    v = jnp.einsum("bnc,oc->bno", x, params["wv"]) + params["bv"]
    energy = jnp.einsum("bno,bmo->bnm", q, k)
    attn = jax.nn.softmax(energy, axis=-1)
    out = jnp.einsum("bnm,bmc->bnc", attn, v)
    return params["gamma"][0] * out + x


def init_params(key, img_dim, k=8):
    """Deterministic synthetic init matching the module's parameter shapes."""
    ck = img_dim // k
    keys = jax.random.split(key, 6)
    scale = 0.1
    return {
        "wq": scale * jax.random.normal(keys[0], (ck, img_dim), jnp.float32),
        "bq": scale * jax.random.normal(keys[1], (ck,), jnp.float32),
        "wk": scale * jax.random.normal(keys[2], (ck, img_dim), jnp.float32),
        "bk": scale * jax.random.normal(keys[3], (ck,), jnp.float32),
        "wv": scale * jax.random.normal(keys[4], (img_dim, img_dim), jnp.float32),
        "bv": scale * jax.random.normal(keys[5], (img_dim,), jnp.float32),
        # PyTorch init is gamma=0 (identity path); use a nonzero value here so
        # the attention branch is actually exercised.
        "gamma": jnp.array([0.5], jnp.float32),
    }


if __name__ == "__main__":
    B, N, C = 8, 8, 32     # batch, regions (multiple of 8), img_dim (div by 8)
    key = jax.random.PRNGKey(0)
    k_x, k_p = jax.random.split(key)
    images = jax.random.normal(k_x, (B, N, C), jnp.float32)
    params = init_params(k_p, C)

    out = image_proj_forward(images, params)
    out = jax.block_until_ready(out)

    ref = _reference_forward(images, params)
    assert out.shape == (B, N, C)
    # bf16 MXU inputs (f32 accumulation) + approx reciprocal -> relaxed tol.
    assert jnp.allclose(out, ref, atol=5e-2, rtol=5e-2), "mismatch vs reference"
    print("KERNEL_OK")
</pallas_src>

<mosaic_0001>
module attributes {stable_mosaic.version = 11 : i64} {
  func.func @_image_proj_kernel(%arg0: i32, %arg1: memref<4x8x32xf32, #tpu.memory_space<vmem>>, %arg2: memref<32x128xbf16, #tpu.memory_space<vmem>>, %arg3: memref<32x128xbf16, #tpu.memory_space<vmem>>, %arg4: memref<32x32xbf16, #tpu.memory_space<vmem>>, %arg5: memref<1x128xf32, #tpu.memory_space<vmem>>, %arg6: memref<1x128xf32, #tpu.memory_space<vmem>>, %arg7: memref<1x32xf32, #tpu.memory_space<vmem>>, %arg8: memref<1xf32, #tpu.memory_space<smem>>, %arg9: memref<4x8x32xf32, #tpu.memory_space<vmem>>) attributes {dimension_semantics = [#tpu.dimension_semantics<parallel>], iteration_bounds = array<i64: 2>, scalar_prefetch = 0 : i64, scratch_operands = 0 : i64, tpu.core_type = #tpu.core_type<tc>, window_params = [{transform_indices = @transform_0, window_bounds = array<i64: 4, 8, 32>}, {pipeline_mode = #tpu.pipeline_mode<synchronous>, transform_indices = @transform_1, window_bounds = array<i64: 32, 128>}, {pipeline_mode = #tpu.pipeline_mode<synchronous>, transform_indices = @transform_2, window_bounds = array<i64: 32, 128>}, {pipeline_mode = #tpu.pipeline_mode<synchronous>, transform_indices = @transform_3, window_bounds = array<i64: 32, 32>}, {pipeline_mode = #tpu.pipeline_mode<synchronous>, transform_indices = @transform_4, window_bounds = array<i64: 1, 128>}, {pipeline_mode = #tpu.pipeline_mode<synchronous>, transform_indices = @transform_5, window_bounds = array<i64: 1, 128>}, {pipeline_mode = #tpu.pipeline_mode<synchronous>, transform_indices = @transform_6, window_bounds = array<i64: 1, 32>}, {transform_indices = @transform_7, window_bounds = array<i64: 1>}, {transform_indices = @transform_8, window_bounds = array<i64: 4, 8, 32>}]} {
    %c0 = arith.constant 0 : index
    %c0_0 = arith.constant 0 : index
    %c0_1 = arith.constant 0 : index
    %0 = vector.load %arg1[%c0, %c0_0, %c0_1] : memref<4x8x32xf32, #tpu.memory_space<vmem>>, vector<4x8x32xf32>
    %1 = arith.truncf %0 : vector<4x8x32xf32> to vector<4x8x32xbf16>
    %2 = vector.shape_cast %1 : vector<4x8x32xbf16> to vector<32x32xbf16>
    %c0_2 = arith.constant 0 : index
    %c0_3 = arith.constant 0 : index
    %3 = vector.load %arg2[%c0_2, %c0_3] : memref<32x128xbf16, #tpu.memory_space<vmem>>, vector<32x128xbf16>
    %cst = arith.constant dense<0.000000e+00> : vector<32x128xf32>
    %4 = tpu.matmul %2, %3, %cst {dimension_numbers = #tpu.dot_dimension_numbers<[1], [0], [0], [1], [0, 0, 1, 1], [], []>} : vector<32x32xbf16>, vector<32x128xbf16>, vector<32x128xf32> -> vector<32x128xf32>
    %c0_4 = arith.constant 0 : index
    %c0_5 = arith.constant 0 : index
    %5 = vector.load %arg5[%c0_4, %c0_5] : memref<1x128xf32, #tpu.memory_space<vmem>>, vector<1x128xf32>
    %6 = vector.broadcast %5 : vector<1x128xf32> to vector<32x128xf32>
    %7 = arith.addf %4, %6 : vector<32x128xf32>
    %c0_6 = arith.constant 0 : index
    %c0_7 = arith.constant 0 : index
    %8 = vector.load %arg3[%c0_6, %c0_7] : memref<32x128xbf16, #tpu.memory_space<vmem>>, vector<32x128xbf16>
    %cst_8 = arith.constant dense<0.000000e+00> : vector<32x128xf32>
    %9 = tpu.matmul %2, %8, %cst_8 {dimension_numbers = #tpu.dot_dimension_numbers<[1], [0], [0], [1], [0, 0, 1, 1], [], []>} : vector<32x32xbf16>, vector<32x128xbf16>, vector<32x128xf32> -> vector<32x128xf32>
    %c0_9 = arith.constant 0 : index
    %c0_10 = arith.constant 0 : index
    %10 = vector.load %arg6[%c0_9, %c0_10] : memref<1x128xf32, #tpu.memory_space<vmem>>, vector<1x128xf32>
    %11 = vector.broadcast %10 : vector<1x128xf32> to vector<32x128xf32>
    %12 = arith.addf %9, %11 : vector<32x128xf32>
    %c0_11 = arith.constant 0 : index
    %c0_12 = arith.constant 0 : index
    %13 = vector.load %arg4[%c0_11, %c0_12] : memref<32x32xbf16, #tpu.memory_space<vmem>>, vector<32x32xbf16>
    %cst_13 = arith.constant dense<0.000000e+00> : vector<32x32xf32>
    %14 = tpu.matmul %2, %13, %cst_13 {dimension_numbers = #tpu.dot_dimension_numbers<[1], [0], [0], [1], [0, 0, 1, 1], [], []>} : vector<32x32xbf16>, vector<32x32xbf16>, vector<32x32xf32> -> vector<32x32xf32>
    %c0_14 = arith.constant 0 : index
    %c0_15 = arith.constant 0 : index
    %15 = vector.load %arg7[%c0_14, %c0_15] : memref<1x32xf32, #tpu.memory_space<vmem>>, vector<1x32xf32>
    %16 = vector.broadcast %15 : vector<1x32xf32> to vector<32x32xf32>
    %17 = arith.addf %14, %16 : vector<32x32xf32>
    %18 = vector.shape_cast %7 : vector<32x128xf32> to vector<4x8x128xf32>
    %19 = vector.shape_cast %12 : vector<32x128xf32> to vector<4x8x128xf32>
    %20 = vector.shape_cast %17 : vector<32x32xf32> to vector<4x8x32xf32>
    %cst_16 = arith.constant dense<0.000000e+00> : vector<4x8x8xf32>
    %21 = tpu.matmul %18, %19, %cst_16 {dimension_numbers = #tpu.dot_dimension_numbers<[2], [2], [1], [1], [0, 0, 0, 1, 1, 1], [0], [0]>} : vector<4x8x128xf32>, vector<4x8x128xf32>, vector<4x8x8xf32> -> vector<4x8x8xf32>
    %cst_17 = arith.constant dense<0xFF800000> : vector<4x8xf32>
    %22 = vector.multi_reduction <maximumf>, %21, %cst_17 [2] : vector<4x8x8xf32> to vector<4x8xf32>
    %23 = vector.shape_cast %22 : vector<4x8xf32> to vector<4x8x1xf32>
    %24 = vector.broadcast %23 : vector<4x8x1xf32> to vector<4x8x8xf32>
    %25 = arith.subf %21, %24 : vector<4x8x8xf32>
    %26 = math.exp %25 : vector<4x8x8xf32>
    %cst_18 = arith.constant dense<0.000000e+00> : vector<4x8xf32>
    %27 = vector.multi_reduction <add>, %26, %cst_18 [2] : vector<4x8x8xf32> to vector<4x8xf32>
    %28 = vector.shape_cast %27 : vector<4x8xf32> to vector<4x8x1xf32>
    %29 = tpu.reciprocal %28 {approx = true} : vector<4x8x1xf32> -> vector<4x8x1xf32>
    %30 = vector.broadcast %29 : vector<4x8x1xf32> to vector<4x8x8xf32>
    %31 = arith.mulf %26, %30 : vector<4x8x8xf32>
    %32 = arith.truncf %31 : vector<4x8x8xf32> to vector<4x8x8xbf16>
    %33 = arith.truncf %20 : vector<4x8x32xf32> to vector<4x8x32xbf16>
    %cst_19 = arith.constant dense<0.000000e+00> : vector<4x8x32xf32>
    %34 = tpu.matmul %32, %33, %cst_19 {dimension_numbers = #tpu.dot_dimension_numbers<[2], [1], [1], [2], [0, 0, 0, 1, 1, 2], [0], [0]>} : vector<4x8x8xbf16>, vector<4x8x32xbf16>, vector<4x8x32xf32> -> vector<4x8x32xf32>
    %c0_20 = arith.constant 0 : index
    %35 = memref.load %arg8[%c0_20] : memref<1xf32, #tpu.memory_space<smem>>
    %36 = vector.broadcast %35 : f32 to vector<4x8x32xf32>
    %37 = arith.mulf %36, %34 : vector<4x8x32xf32>
    %38 = arith.addf %37, %0 : vector<4x8x32xf32>
    %c0_21 = arith.constant 0 : index
    %c0_22 = arith.constant 0 : index
    %c0_23 = arith.constant 0 : index
    %39 = vector.load %arg9[%c0_21, %c0_22, %c0_23] : memref<4x8x32xf32, #tpu.memory_space<vmem>>, vector<4x8x32xf32>
    tpu.vector_store %arg9[%c0_21, %c0_22, %c0_23], %38 {strides = array<i32>} : memref<4x8x32xf32, #tpu.memory_space<vmem>>, vector<4x8x32xf32>,
    return
  }
  func.func @transform_0(%arg0: i32) -> (i32, i32, i32) {
    %c0_i32 = arith.constant 0 : i32
    %c0_i32_0 = arith.constant 0 : i32
    %c0_i32_1 = arith.constant 0 : i32
    return %arg0, %c0_i32, %c0_i32_0 : i32, i32, i32
  }
  func.func @transform_1(%arg0: i32) -> (i32, i32) {
    %c0_i32 = arith.constant 0 : i32
    %c0_i32_0 = arith.constant 0 : i32
    %c0_i32_1 = arith.constant 0 : i32
    return %c0_i32, %c0_i32_0 : i32, i32
  }
  func.func @transform_2(%arg0: i32) -> (i32, i32) {
    %c0_i32 = arith.constant 0 : i32
    %c0_i32_0 = arith.constant 0 : i32
    %c0_i32_1 = arith.constant 0 : i32
    return %c0_i32, %c0_i32_0 : i32, i32
  }
  func.func @transform_3(%arg0: i32) -> (i32, i32) {
    %c0_i32 = arith.constant 0 : i32
    %c0_i32_0 = arith.constant 0 : i32
    %c0_i32_1 = arith.constant 0 : i32
    return %c0_i32, %c0_i32_0 : i32, i32
  }
  func.func @transform_4(%arg0: i32) -> (i32, i32) {
    %c0_i32 = arith.constant 0 : i32
    %c0_i32_0 = arith.constant 0 : i32
    %c0_i32_1 = arith.constant 0 : i32
    return %c0_i32, %c0_i32_0 : i32, i32
  }
  func.func @transform_5(%arg0: i32) -> (i32, i32) {
    %c0_i32 = arith.constant 0 : i32
    %c0_i32_0 = arith.constant 0 : i32
    %c0_i32_1 = arith.constant 0 : i32
    return %c0_i32, %c0_i32_0 : i32, i32
  }
  func.func @transform_6(%arg0: i32) -> (i32, i32) {
    %c0_i32 = arith.constant 0 : i32
    %c0_i32_0 = arith.constant 0 : i32
    %c0_i32_1 = arith.constant 0 : i32
    return %c0_i32, %c0_i32_0 : i32, i32
  }
  func.func @transform_7(%arg0: i32) -> i32 {
    %c0_i32 = arith.constant 0 : i32
    %c0_i32_0 = arith.constant 0 : i32
    return %c0_i32 : i32
  }
  func.func @transform_8(%arg0: i32) -> (i32, i32, i32) {
    %c0_i32 = arith.constant 0 : i32
    %c0_i32_0 = arith.constant 0 : i32
    %c0_i32_1 = arith.constant 0 : i32
    return %arg0, %c0_i32, %c0_i32_0 : i32, i32, i32
  }
}

</mosaic_0001>

<llo_original>
// kernel: tpu_custom_call.1
$region0: #{tpu_custom_call.1}
  #allocation0 [shape = 'u32[]', space=smem, size = 0x4, offset = 0x4, fixed_abs, tag = 'smem constant byte address 0x4 - core index']
  #allocation1 [shape = 'u32[72,128]{1,0:T(1,128)}', space=vmem, size = 0x9000, scoped, tag = 'internal scratch']
  #allocation2 [shape = 'f32[1]{0:T(128)S(6)}', space=smem, size = 0x200, scoped, tag = 'scoped memory for tpu_custom_call.1']
  %s0 = inlined_call_operand.hbm [shape: f32[8,8,32], index: 0, kind: input, shape index: {}]
  %s1 = inlined_call_operand.hbm [shape: bf16[32,128], index: 1, kind: input, shape index: {}]
  %s2 = inlined_call_operand.hbm [shape: bf16[32,128], index: 2, kind: input, shape index: {}]
  %s3 = inlined_call_operand.hbm [shape: bf16[32,32], index: 3, kind: input, shape index: {}]
  %s4 = inlined_call_operand.vmem [shape: f32[1,128], index: 4, kind: input, shape index: {}]
  %s5 = inlined_call_operand.vmem [shape: f32[1,128], index: 5, kind: input, shape index: {}]
  %s6 = inlined_call_operand.vmem [shape: f32[1,32], index: 6, kind: input, shape index: {}]
  %s7 = inlined_call_operand.<no memory space> [shape: f32[1], index: 7, kind: input, shape index: {}]
  %s8 = inlined_call_operand.hbm [shape: f32[8,8,32], index: 8, kind: output, shape index: {}]
  %s9 = sld [smem:[#allocation0]]
  $region81: #{tpu_custom_call.1} parent=0
    _
  %s11 = ssub.s32 1, %s9
  %s12 = scalar_select 0, %s11, %s9
  %13 = sst [smem:[#allocation2]] %s7
  $region1: #{tpu_custom_call.1} parent=0
    #allocation3 [shape = 'u8[32768]{0}', space=vmem, size = 0x8000, scoped, tag = 'input window, operand 0']
    #allocation4 [shape = 's32[2]{0}', space=sflag, size = 0x8, scoped, tag = 'scoped memory for tpu_custom_call.1']
    #allocation5 [shape = 's32[2]{0}', space=sflag, size = 0x8, scoped, tag = 'scoped memory for tpu_custom_call.1']
    #allocation6 [shape = 'u8[8192]{0}', space=vmem, size = 0x2000, scoped, tag = 'input window, operand 1, single buffered']
    #allocation7 [shape = 's32[1]{0}', space=sflag, size = 0x4, scoped, tag = 'scoped memory for tpu_custom_call.1']
    #allocation8 [shape = 'u8[8192]{0}', space=vmem, size = 0x2000, scoped, tag = 'input window, operand 2, single buffered']
    #allocation9 [shape = 'u8[8192]{0}', space=vmem, size = 0x2000, scoped, tag = 'input window, operand 3, single buffered']
    #allocation10 [shape = 's32[1]{0}', space=sflag, size = 0x4, scoped, tag = 'scoped memory for tpu_custom_call.1']
    #allocation11 [shape = 'u8[32768]{0}', space=vmem, size = 0x8000, scoped, tag = 'output window, operand 0']
    %14 = vsyncpa [#allocation4], 0
    %s15 = scalar_lea.sflag [#allocation4], 1
    %16 = vsyncpa %s15, 0
    %17 = vsyncpa [#allocation7], 0
    %18 = vsyncpa [#allocation10], 0
    %19 = vsyncpa [#allocation5], 0
    %s20 = scalar_lea.sflag [#allocation5], 1
    %21 = vsyncpa %s20, 0
    loop: start=0, step=1, limit=4
    $region2: #{tpu_custom_call.1} parent=1 // loop_pre_header
      _
    $region3: #{tpu_custom_call.1} parent=1 // loop_header
      %s23 = sphi 0, %s27
      %p24 = scmp.ge.s32.totalorder %s23, 4
      %s33 = sphi 0, %s35
      %s36 = sphi 0, %s33
      %s37 = sphi 0, %s36
      %s53 = sphi 0, %s37
      %s57 = sphi 0, %s57
      %s59 = sphi 0, %s57
      %s60 = sphi 0, %s59
      %s74 = sphi 0, %s60
      %s78 = sphi 0, %s78
      %s80 = sphi 0, %s78
      %s81 = sphi 0, %s80
      %s95 = sphi 0, %s81
      %s99 = sphi 0, %s99
      %s101 = sphi 0, %s99
      %s102 = sphi 0, %s101
      %s116 = sphi 0, %s102
      %s120 = sphi 0, %s120
      %s122 = sphi 0, %s120
      %s123 = sphi 0, %s122
      %s137 = sphi 0, %s123
      %s141 = sphi 0, %s141
      %s143 = sphi 0, %s141
      %s144 = sphi 0, %s143
      %s158 = sphi 0, %s144
      %s162 = sphi 0, %s162
      %s164 = sphi 0, %s162
      %s165 = sphi 0, %s164
      %s179 = sphi 0, %s165
      %s183 = sphi 0, %s183
      %s185 = sphi 0, %s183
      %s186 = sphi 0, %s185
      %s200 = sphi 0, %s186
      %s206 = sphi 0, %s208
      %s209 = sphi 0, %s206
      %s210 = sphi 0, %s209
      %s226 = sphi 0, %s210
    $region4: #{tpu_custom_call.1} parent=1 // loop_header_branch
      %26 = sbr.rel (%p24) target = $region8
    $region5: #{tpu_custom_call.1} parent=1 // loop_body
      %s28 = ssub.s32 %s23, 1
      %s29 = ssub.s32 %s23, 2
      %s30 = sadd.s32 %s23, 1
      %s31 = ssub.s32 %s23, %s30
      %p32 = scmp.eq.s32.totalorder %s31, 0
      %s34 = sadd.s32 %s33, 1
      %s35 = scalar_select %p32, %s33, %s34
      %p38 = pneg %p32
      %p39 = scmp.eq.s32.totalorder %s23, 1
      %p40 = por %p38, %p39
      %p41 = scmp.ne.s32.totalorder %s33, %s36
      %p42 = scmp.eq.s32.totalorder %s23, 0
      %p43 = por %p41, %p42
      %p44 = scmp.ne.s32.totalorder %s33, %s36
      %p45 = scmp.eq.s32.totalorder %s28, 1
      %p46 = por %p44, %p45
      %p47 = scmp.ne.s32.totalorder %s36, %s37
      %p48 = scmp.eq.s32.totalorder %s28, 0
      %p49 = por %p47, %p48
      %p50 = scmp.ne.s32.totalorder %s36, %s37
      %p51 = scmp.eq.s32.totalorder %s29, 1
      %p52 = por %p50, %p51
      %p54 = scmp.ne.s32.totalorder %s37, %s53
      %p55 = scmp.eq.s32.totalorder %s29, 0
      %p56 = por %p54, %p55
      %s58 = sadd.s32 %s57, 1
      %p61 = scmp.eq.s32.totalorder %s23, 1
      %p62 = scmp.ne.s32.totalorder %s57, %s59
      %p63 = scmp.eq.s32.totalorder %s23, 0
      %p64 = por %p62, %p63
      %p65 = scmp.ne.s32.totalorder %s57, %s59
      %p66 = scmp.eq.s32.totalorder %s28, 1
      %p67 = por %p65, %p66
      %p68 = scmp.ne.s32.totalorder %s59, %s60
      %p69 = scmp.eq.s32.totalorder %s28, 0
      %p70 = por %p68, %p69
      %p71 = scmp.ne.s32.totalorder %s59, %s60
      %p72 = scmp.eq.s32.totalorder %s29, 1
      %p73 = por %p71, %p72
      %p75 = scmp.ne.s32.totalorder %s60, %s74
      %p76 = scmp.eq.s32.totalorder %s29, 0
      %p77 = por %p75, %p76
      %s79 = sadd.s32 %s78, 1
      %p82 = scmp.eq.s32.totalorder %s23, 1
      %p83 = scmp.ne.s32.totalorder %s78, %s80
      %p84 = scmp.eq.s32.totalorder %s23, 0
      %p85 = por %p83, %p84
      %p86 = scmp.ne.s32.totalorder %s78, %s80
      %p87 = scmp.eq.s32.totalorder %s28, 1
      %p88 = por %p86, %p87
      %p89 = scmp.ne.s32.totalorder %s80, %s81
      %p90 = scmp.eq.s32.totalorder %s28, 0
      %p91 = por %p89, %p90
      %p92 = scmp.ne.s32.totalorder %s80, %s81
      %p93 = scmp.eq.s32.totalorder %s29, 1
      %p94 = por %p92, %p93
      %p96 = scmp.ne.s32.totalorder %s81, %s95
      %p97 = scmp.eq.s32.totalorder %s29, 0
      %p98 = por %p96, %p97
      %s100 = sadd.s32 %s99, 1
      %p103 = scmp.eq.s32.totalorder %s23, 1
      %p104 = scmp.ne.s32.totalorder %s99, %s101
      %p105 = scmp.eq.s32.totalorder %s23, 0
      %p106 = por %p104, %p105
      %p107 = scmp.ne.s32.totalorder %s99, %s101
      %p108 = scmp.eq.s32.totalorder %s28, 1
      %p109 = por %p107, %p108
      %p110 = scmp.ne.s32.totalorder %s101, %s102
      %p111 = scmp.eq.s32.totalorder %s28, 0
      %p112 = por %p110, %p111
      %p113 = scmp.ne.s32.totalorder %s101, %s102
      %p114 = scmp.eq.s32.totalorder %s29, 1
      %p115 = por %p113, %p114
      %p117 = scmp.ne.s32.totalorder %s102, %s116
      %p118 = scmp.eq.s32.totalorder %s29, 0
      %p119 = por %p117, %p118
      %s121 = sadd.s32 %s120, 1
      %p124 = scmp.eq.s32.totalorder %s23, 1
      %p125 = scmp.ne.s32.totalorder %s120, %s122
      %p126 = scmp.eq.s32.totalorder %s23, 0
      %p127 = por %p125, %p126
      %p128 = scmp.ne.s32.totalorder %s120, %s122
      %p129 = scmp.eq.s32.totalorder %s28, 1
      %p130 = por %p128, %p129
      %p131 = scmp.ne.s32.totalorder %s122, %s123
      %p132 = scmp.eq.s32.totalorder %s28, 0
      %p133 = por %p131, %p132
      %p134 = scmp.ne.s32.totalorder %s122, %s123
      %p135 = scmp.eq.s32.totalorder %s29, 1
      %p136 = por %p134, %p135
      %p138 = scmp.ne.s32.totalorder %s123, %s137
      %p139 = scmp.eq.s32.totalorder %s29, 0
      %p140 = por %p138, %p139
      %s142 = sadd.s32 %s141, 1
      %p145 = scmp.eq.s32.totalorder %s23, 1
      %p146 = scmp.ne.s32.totalorder %s141, %s143
      %p147 = scmp.eq.s32.totalorder %s23, 0
      %p148 = por %p146, %p147
      %p149 = scmp.ne.s32.totalorder %s141, %s143
      %p150 = scmp.eq.s32.totalorder %s28, 1
      %p151 = por %p149, %p150
      %p152 = scmp.ne.s32.totalorder %s143, %s144
      %p153 = scmp.eq.s32.totalorder %s28, 0
      %p154 = por %p152, %p153
      %p155 = scmp.ne.s32.totalorder %s143, %s144
      %p156 = scmp.eq.s32.totalorder %s29, 1
      %p157 = por %p155, %p156
      %p159 = scmp.ne.s32.totalorder %s144, %s158
      %p160 = scmp.eq.s32.totalorder %s29, 0
      %p161 = por %p159, %p160
      %s163 = sadd.s32 %s162, 1
      %p166 = scmp.eq.s32.totalorder %s23, 1
      %p167 = scmp.ne.s32.totalorder %s162, %s164
      %p168 = scmp.eq.s32.totalorder %s23, 0
      %p169 = por %p167, %p168
      %p170 = scmp.ne.s32.totalorder %s162, %s164
      %p171 = scmp.eq.s32.totalorder %s28, 1
      %p172 = por %p170, %p171
      %p173 = scmp.ne.s32.totalorder %s164, %s165
      %p174 = scmp.eq.s32.totalorder %s28, 0
      %p175 = por %p173, %p174
      %p176 = scmp.ne.s32.totalorder %s164, %s165
      %p177 = scmp.eq.s32.totalorder %s29, 1
      %p178 = por %p176, %p177
      %p180 = scmp.ne.s32.totalorder %s165, %s179
      %p181 = scmp.eq.s32.totalorder %s29, 0
      %p182 = por %p180, %p181
      %s184 = sadd.s32 %s183, 1
      %p187 = scmp.eq.s32.totalorder %s23, 1
      %p188 = scmp.ne.s32.totalorder %s183, %s185
      %p189 = scmp.eq.s32.totalorder %s23, 0
      %p190 = por %p188, %p189
      %p191 = scmp.ne.s32.totalorder %s183, %s185
      %p192 = scmp.eq.s32.totalorder %s28, 1
      %p193 = por %p191, %p192
      %p194 = scmp.ne.s32.totalorder %s185, %s186
      %p195 = scmp.eq.s32.totalorder %s28, 0
      %p196 = por %p194, %p195
      %p197 = scmp.ne.s32.totalorder %s185, %s186
      %p198 = scmp.eq.s32.totalorder %s29, 1
      %p199 = por %p197, %p198
      %p201 = scmp.ne.s32.totalorder %s186, %s200
      %p202 = scmp.eq.s32.totalorder %s29, 0
      %p203 = por %p201, %p202
      %s204 = ssub.s32 %s23, %s30
      %p205 = scmp.eq.s32.totalorder %s204, 0
      %s207 = sadd.s32 %s206, 1
      %s208 = scalar_select %p205, %s206, %s207
      %p211 = pneg %p205
      %p212 = scmp.eq.s32.totalorder %s23, 1
      %p213 = por %p211, %p212
      %p214 = scmp.ne.s32.totalorder %s206, %s209
      %p215 = scmp.eq.s32.totalorder %s23, 0
      %p216 = por %p214, %p215
      %p217 = scmp.ne.s32.totalorder %s206, %s209
      %p218 = scmp.eq.s32.totalorder %s28, 1
      %p219 = por %p217, %p218
      %p220 = scmp.ne.s32.totalorder %s209, %s210
      %p221 = scmp.eq.s32.totalorder %s28, 0
      %p222 = por %p220, %p221
      %p223 = scmp.ne.s32.totalorder %s209, %s210
      %p224 = scmp.eq.s32.totalorder %s29, 1
      %p225 = por %p223, %p224
      %p227 = scmp.ne.s32.totalorder %s210, %s226
      %p228 = scmp.eq.s32.totalorder %s29, 0
      %p229 = por %p227, %p228
      %p230 = scmp.le.s32.totalorder 1, %s23
      %p231 = scmp.lt.s32.totalorder %s23, 3
      %p232 = pnand %p230, %p231
      %p233 = pneg %p232
      // Predicated region
      $region9: #{tpu_custom_call.1} parent=5 // pred_check
        _
      $region10: #{tpu_custom_call.1} parent=5 // pred_check_branch
        %235 = sbr.rel (%p232) target = $region12
      $region11: #{tpu_custom_call.1} parent=5 // pred_region
        %s236 = ssub.s32 %s23, 1
        // Predicated region
        $region13: #{tpu_custom_call.1} parent=11 // pred_check
          %p237 = pneg %p70
        $region14: #{tpu_custom_call.1} parent=11 // pred_check_branch
          %239 = sbr.rel (%p237) target = $region16
        $region15: #{tpu_custom_call.1} parent=11 // pred_region
          %241 = vsyncadd [#allocation7], 0
          %s242 = sshll.u32 %s1, 4
          %s243 = int_to_ptr.hbm [resolvable:$true] %s242
          %s244 = sshll.u32 [#allocation6], 4
          %s245 = int_to_ptr.vmem [resolvable:$true] %s244
          %250 = dma.hbm_to_vmem [thread:$0]  %s243, 256, %s245, [#allocation7], 64, 64, 4
        $region16: #{tpu_custom_call.1} parent=11 // pred_fallthru
          _
        // Predicated region
        $region17: #{tpu_custom_call.1} parent=11 // pred_check
          %p251 = pneg %p91
        $region18: #{tpu_custom_call.1} parent=11 // pred_check_branch
          %253 = sbr.rel (%p251) target = $region20
        $region19: #{tpu_custom_call.1} parent=11 // pred_region
          %255 = vsyncadd [#allocation7], 0
          %s256 = sshll.u32 %s2, 4
          %s257 = int_to_ptr.hbm [resolvable:$true] %s256
          %s258 = sshll.u32 [#allocation8], 4
          %s259 = int_to_ptr.vmem [resolvable:$true] %s258
          %264 = dma.hbm_to_vmem [thread:$0]  %s257, 256, %s259, [#allocation7], 64, 64, 4
        $region20: #{tpu_custom_call.1} parent=11 // pred_fallthru
          _
        // Predicated region
        $region21: #{tpu_custom_call.1} parent=11 // pred_check
          %p265 = pneg %p112
        $region22: #{tpu_custom_call.1} parent=11 // pred_check_branch
          %267 = sbr.rel (%p265) target = $region24
        $region23: #{tpu_custom_call.1} parent=11 // pred_region
          %269 = vsyncadd [#allocation10], 0
          %s270 = sshll.u32 %s3, 4
          %s271 = int_to_ptr.hbm [resolvable:$true] %s270
          %s272 = sshll.u32 [#allocation9], 4
          %s273 = int_to_ptr.vmem [resolvable:$true] %s272
          %278 = dma.hbm_to_vmem [thread:$0]  %s271, 256, %s273, [#allocation10], 64, 64, 4
        $region24: #{tpu_custom_call.1} parent=11 // pred_fallthru
          _
        // Predicated region
        $region25: #{tpu_custom_call.1} parent=11 // pred_check
          %p279 = pneg %p133
        $region26: #{tpu_custom_call.1} parent=11 // pred_check_branch
          %281 = sbr.rel (%p279) target = $region28
        $region27: #{tpu_custom_call.1} parent=11 // pred_region
          _
        $region28: #{tpu_custom_call.1} parent=11 // pred_fallthru
          _
        // Predicated region
        $region29: #{tpu_custom_call.1} parent=11 // pred_check
          %p282 = pneg %p154
        $region30: #{tpu_custom_call.1} parent=11 // pred_check_branch
          %284 = sbr.rel (%p282) target = $region32
        $region31: #{tpu_custom_call.1} parent=11 // pred_region
          _
        $region32: #{tpu_custom_call.1} parent=11 // pred_fallthru
          _
        // Predicated region
        $region33: #{tpu_custom_call.1} parent=11 // pred_check
          %p285 = pneg %p175
        $region34: #{tpu_custom_call.1} parent=11 // pred_check_branch
          %287 = sbr.rel (%p285) target = $region36
        $region35: #{tpu_custom_call.1} parent=11 // pred_region
          _
        $region36: #{tpu_custom_call.1} parent=11 // pred_fallthru
          _
        // Predicated region
        $region37: #{tpu_custom_call.1} parent=11 // pred_check
          %p288 = pneg %p196
        $region38: #{tpu_custom_call.1} parent=11 // pred_check_branch
          %290 = sbr.rel (%p288) target = $region40
        $region39: #{tpu_custom_call.1} parent=11 // pred_region
          _
        $region40: #{tpu_custom_call.1} parent=11 // pred_fallthru
          _
      $region12: #{tpu_custom_call.1} parent=5 // pred_fallthru
        _
      %p291 = scmp.lt.s32.totalorder %s23, 2
      // Predicated region
      $region41: #{tpu_custom_call.1} parent=5 // pred_check
        %p292 = pneg %p291
      $region42: #{tpu_custom_call.1} parent=5 // pred_check_branch
        %294 = sbr.rel (%p292) target = $region44
      $region43: #{tpu_custom_call.1} parent=5 // pred_region
        // Predicated region
        $region45: #{tpu_custom_call.1} parent=43 // pred_check
          %p295 = pneg %p43
        $region46: #{tpu_custom_call.1} parent=43 // pred_check_branch
          %297 = sbr.rel (%p295) target = $region48
        $region47: #{tpu_custom_call.1} parent=43 // pred_region
          %s298 = sand.u32 %s33, 1
          %s299 = scalar_lea.sflag [#allocation4], %s298
          %s300 = sand.u32 %s33, 1
          %s301 = smul.addr %s300, 32
          %s302 = scalar_lea.vmem [#allocation3], %s301
          %s303 = smul.u32 4, %s23
          %305 = vsyncadd %s299, 0
          %s306 = smul.addr %s303, 8
          %s307 = scalar_lea.hbm %s0, %s306
          %s308 = sshll.u32 %s307, 4
          %s309 = int_to_ptr.hbm [resolvable:$true] %s308
          %s310 = sshll.u32 %s302, 4
          %s311 = int_to_ptr.vmem [resolvable:$true] %s310
          %316 = dma.hbm_to_vmem [thread:$0]  %s309, 512, %s311, %s299, 128, 128, 8
        $region48: #{tpu_custom_call.1} parent=43 // pred_fallthru
          _
      $region44: #{tpu_custom_call.1} parent=5 // pred_fallthru
        _
      %p317 = scmp.le.s32.totalorder 1, %s23
      %p318 = scmp.lt.s32.totalorder %s23, 3
      %p319 = pnand %p317, %p318
      %p320 = pneg %p319
      // Predicated region
      $region49: #{tpu_custom_call.1} parent=5 // pred_check
        _
      $region50: #{tpu_custom_call.1} parent=5 // pred_check_branch
        %322 = sbr.rel (%p319) target = $region52
      $region51: #{tpu_custom_call.1} parent=5 // pred_region
        %s323 = ssub.s32 %s23, 1
        %s324 = sand.u32 %s36, 1
        %s325 = scalar_lea.sflag [#allocation4], %s324
        %s326 = sand.u32 %s36, 1
        %s327 = smul.addr %s326, 32
        %s328 = scalar_lea.vmem [#allocation3], %s327
        // Predicated region
        $region53: #{tpu_custom_call.1} parent=51 // pred_check
          %p329 = pneg %p49
        $region54: #{tpu_custom_call.1} parent=51 // pred_check_branch
          %331 = sbr.rel (%p329) target = $region56
        $region55: #{tpu_custom_call.1} parent=51 // pred_region
          %333 = dma.done %s325, 512
        $region56: #{tpu_custom_call.1} parent=51 // pred_fallthru
          _
        // Predicated region
        $region57: #{tpu_custom_call.1} parent=51 // pred_check
          %p334 = pneg %p70
        $region58: #{tpu_custom_call.1} parent=51 // pred_check_branch
          %336 = sbr.rel (%p334) target = $region60
        $region59: #{tpu_custom_call.1} parent=51 // pred_region
          %338 = dma.done [#allocation7], 256
        $region60: #{tpu_custom_call.1} parent=51 // pred_fallthru
          _
        // Predicated region
        $region61: #{tpu_custom_call.1} parent=51 // pred_check
          %p339 = pneg %p91
        $region62: #{tpu_custom_call.1} parent=51 // pred_check_branch
          %341 = sbr.rel (%p339) target = $region64
        $region63: #{tpu_custom_call.1} parent=51 // pred_region
          %343 = dma.done [#allocation7], 256
        $region64: #{tpu_custom_call.1} parent=51 // pred_fallthru
          _
        // Predicated region
        $region65: #{tpu_custom_call.1} parent=51 // pred_check
          %p344 = pneg %p112
        $region66: #{tpu_custom_call.1} parent=51 // pred_check_branch
          %346 = sbr.rel (%p344) target = $region68
        $region67: #{tpu_custom_call.1} parent=51 // pred_region
          %348 = dma.done [#allocation10], 256
        $region68: #{tpu_custom_call.1} parent=51 // pred_fallthru
          _
        %s349 = sand.u32 %s36, 1
        %s350 = scalar_lea.sflag [#allocation4], %s349
        %s351 = sand.u32 %s36, 1
        %s352 = smul.addr %s351, 32
        %s353 = scalar_lea.vmem [#allocation3], %s352
        %p354 = pneg %p49
        %p355 = pneg %p46
        %p356 = pneg %p70
        %p357 = pneg %p67
        %p358 = pneg %p91
        %p359 = pneg %p88
        %p360 = pneg %p112
        %p361 = pneg %p109
        %p362 = pneg %p133
        %p363 = pneg %p130
        %p364 = pneg %p154
        %p365 = pneg %p151
        %p366 = pneg %p175
        %p367 = pneg %p172
        %p368 = pneg %p196
        %p369 = pneg %p193
        %p370 = pneg %p222
        %p371 = pneg %p219
        %s372 = sand.u32 %s209, 1
        %s373 = scalar_lea.sflag [#allocation5], %s372
        %s374 = sand.u32 %s209, 1
        %s375 = smul.addr %s374, 32
        %s376 = scalar_lea.vmem [#allocation11], %s375
        %s377 = smul.u32 4, %s28
        %s378 = smul.u32 4, %s28
        %v380 = vld [vmem:[%s328] sm:$0xff]
        %v381 = vld [vmem:[%s328 + $0x8] sm:$0xff]
        %v382 = vld [vmem:[%s328 + $0x10] sm:$0xff]
        %v383 = vld [vmem:[%s328 + $0x18] sm:$0xff]
        %v384 = vpack.c.bf16 %v380, %v380
        %v385 = vpack.c.bf16 %v381, %v381
        %v386 = vpack.c.bf16 %v382, %v382
        %v387 = vpack.c.bf16 %v383, %v383
        %v388 = vld [vmem:[#allocation6] sm:$0xf]
        %v389 = vld [vmem:[#allocation6 + $0x4] sm:$0xf]
        %v390 = vld [vmem:[#allocation6 + $0x8] sm:$0xf]
        %v391 = vld [vmem:[#allocation6 + $0xc] sm:$0xf]
        %v392 = vld [vmem:[%s4] sm:$0x1]
        %v394 = vperm.slane %v392, 0
        %v400 = vunpack.c.l.b16 %v384
        %v401 = vunpack.c.l.b16 %v385
        %v402 = vunpack.c.l.b16 %v386
        %v403 = vunpack.c.l.b16 %v387
        %v404 = vpack.c.b16 %v401, %v400
        %v405 = vpack.c.b16 %v403, %v402
        %v410 = vunpack.c.l.b16 %v388
        %v411 = vunpack.c.l.b16 %v389
        %v412 = vunpack.c.l.b16 %v390
        %v413 = vunpack.c.l.b16 %v391
        %v414 = vpack.c.b16 %v411, %v410
        %v415 = vpack.c.b16 %v413, %v412
        %vm418 = vcmask 261120
        %v420 = vsel %vm418, %v404, 0
        %v423 = vsel %vm418, %v405, 0
        %425 = vmatpush.bf16.msra.mxu0 0
        %426 = vmatpush.bf16.msra.mxu0 0
        %427 = vmatpush.bf16.msra.mxu0 0
        %428 = vmatpush.bf16.msra.mxu0 0
        %429 = vmatpush.bf16.msra.mxu0 0
        %430 = vmatpush.bf16.msra.mxu0 0
        %431 = vmatpush.bf16.msra.mxu0 %v415
        %432 = vmatpush.bf16.msra.mxu0 %v414
        %433 = vmatmul.bf16.gmra.mxu0 %v420
        %v434 = vpop.f32.mrf.mxu0
        %v435 = vadd.f32 %v394, %v434
        %v436 = vpop.f32.mrf.mxu0
        %v437 = vadd.f32 %v394, %v436
        %438 = vmatmul.bf16.gmra.mxu0 %v423
        %v439 = vpop.f32.mrf.mxu0
        %v440 = vadd.f32 %v394, %v439
        %v441 = vpop.f32.mrf.mxu0
        %v442 = vadd.f32 %v394, %v441
        %443 = vdwg.mxu0
        %v444 = vld [vmem:[#allocation8] sm:$0xf]
        %v445 = vld [vmem:[#allocation8 + $0x4] sm:$0xf]
        %v446 = vld [vmem:[#allocation8 + $0x8] sm:$0xf]
        %v447 = vld [vmem:[#allocation8 + $0xc] sm:$0xf]
        %v448 = vld [vmem:[%s5] sm:$0x1]
        %v450 = vperm.slane %v448, 0
        %v456 = vunpack.c.l.b16 %v444
        %v457 = vunpack.c.l.b16 %v445
        %v458 = vunpack.c.l.b16 %v446
        %v459 = vunpack.c.l.b16 %v447
        %v460 = vpack.c.b16 %v457, %v456
        %v461 = vpack.c.b16 %v459, %v458
        %464 = vmatpush.bf16.msra.mxu0 0
        %465 = vmatpush.bf16.msra.mxu0 0
        %466 = vmatpush.bf16.msra.mxu0 0
        %467 = vmatpush.bf16.msra.mxu0 0
        %468 = vmatpush.bf16.msra.mxu0 0
        %469 = vmatpush.bf16.msra.mxu0 0
        %470 = vmatpush.bf16.msra.mxu0 %v461
        %471 = vmatpush.bf16.msra.mxu0 %v460
        %472 = vmatmul.bf16.gmra.mxu0 %v420
        %v473 = vpop.f32.mrf.mxu0
        %v474 = vadd.f32 %v450, %v473
        %v475 = vpop.f32.mrf.mxu0
        %v476 = vadd.f32 %v450, %v475
        %477 = vmatmul.bf16.gmra.mxu0 %v423
        %v478 = vpop.f32.mrf.mxu0
        %v479 = vadd.f32 %v450, %v478
        %v480 = vpop.f32.mrf.mxu0
        %v481 = vadd.f32 %v450, %v480
        %482 = vdwg.mxu0
        %v483 = vld [vmem:[#allocation9] sm:$0xf]
        %v484 = vld [vmem:[#allocation9 + $0x4] sm:$0xf]
        %v485 = vld [vmem:[#allocation9 + $0x8] sm:$0xf]
        %v486 = vld [vmem:[#allocation9 + $0xc] sm:$0xf]
        %v487 = vld [vmem:[%s6] sm:$0x1]
        %v489 = vperm.slane %v487, 0
        %v495 = vunpack.c.l.b16 %v483
        %v496 = vunpack.c.l.b16 %v484
        %v497 = vunpack.c.l.b16 %v485
        %v498 = vunpack.c.l.b16 %v486
        %v499 = vpack.c.b16 %v496, %v495
        %v500 = vpack.c.b16 %v498, %v497
        %503 = vmatpush.bf16.msra.mxu0 0
        %504 = vmatpush.bf16.msra.mxu0 0
        %505 = vmatpush.bf16.msra.mxu0 0
        %506 = vmatpush.bf16.msra.mxu0 0
        %507 = vmatpush.bf16.msra.mxu0 0
        %508 = vmatpush.bf16.msra.mxu0 0
        %509 = vmatpush.bf16.msra.mxu0 %v500
        %510 = vmatpush.bf16.msra.mxu0 %v499
        %511 = vmatmul.bf16.gmra.mxu0 %v420
        %v512 = vpop.f32.mrf.mxu0
        %v513 = vadd.f32 %v489, %v512
        %v514 = vpop.f32.mrf.mxu0
        %v515 = vadd.f32 %v489, %v514
        %516 = vmatmul.bf16.gmra.mxu0 %v423
        %v517 = vpop.f32.mrf.mxu0
        %v518 = vadd.f32 %v489, %v517
        %v519 = vpop.f32.mrf.mxu0
        %v520 = vadd.f32 %v489, %v519
        %521 = vdwg.mxu0
        %522 = vmatpush.xpose.msra.mxu0 0.0
        %523 = vmatpush.xpose.msra.mxu0 0.0
        %524 = vmatpush.xpose.msra.mxu0 0.0
        %525 = vmatpush.xpose.msra.mxu0 0.0
        %526 = vmatpush.xpose.msra.mxu0 0.0
        %527 = vmatpush.xpose.msra.mxu0 0.0
        %528 = vmatpush.xpose.msra.mxu0 0.0
        %529 = vmatpush.xpose.msra.mxu0 0.0
        %530 = vmatpush.xpose.msra.mxu0 0.0
        %531 = vmatpush.xpose.msra.mxu0 0.0
        %532 = vmatpush.xpose.msra.mxu0 0.0
        %533 = vmatpush.xpose.msra.mxu0 0.0
        %534 = vmatpush.xpose.msra.mxu0 0.0
        %535 = vmatpush.xpose.msra.mxu0 0.0
        %536 = vmatpush.xpose.msra.mxu0 0.0
        %537 = vmatpush.xpose.msra.mxu0 %v474
        %538 = vmatmul.f32.gmra.mxu0 %v435
        %v539 = vpop.f32.mrf.mxu0
        %v540 = vadd.f32 0.0, %v539
        %541 = vdwg.mxu0
        %542 = vmatpush.xpose.msra.mxu0 0.0
        %543 = vmatpush.xpose.msra.mxu0 0.0
        %544 = vmatpush.xpose.msra.mxu0 0.0
        %545 = vmatpush.xpose.msra.mxu0 0.0
        %546 = vmatpush.xpose.msra.mxu0 0.0
        %547 = vmatpush.xpose.msra.mxu0 0.0
        %548 = vmatpush.xpose.msra.mxu0 0.0
        %549 = vmatpush.xpose.msra.mxu0 0.0
        %550 = vmatpush.xpose.msra.mxu0 0.0
        %551 = vmatpush.xpose.msra.mxu0 0.0
        %552 = vmatpush.xpose.msra.mxu0 0.0
        %553 = vmatpush.xpose.msra.mxu0 0.0
        %554 = vmatpush.xpose.msra.mxu0 0.0
        %555 = vmatpush.xpose.msra.mxu0 0.0
        %556 = vmatpush.xpose.msra.mxu0 0.0
        %557 = vmatpush.xpose.msra.mxu0 %v476
        %558 = vmatmul.f32.gmra.mxu0 %v437
        %v559 = vpop.f32.mrf.mxu0
        %v560 = vadd.f32 0.0, %v559
        %561 = vdwg.mxu0
        %562 = vmatpush.xpose.msra.mxu0 0.0
        %563 = vmatpush.xpose.msra.mxu0 0.0
        %564 = vmatpush.xpose.msra.mxu0 0.0
        %565 = vmatpush.xpose.msra.mxu0 0.0
        %566 = vmatpush.xpose.msra.mxu0 0.0
        %567 = vmatpush.xpose.msra.mxu0 0.0
        %568 = vmatpush.xpose.msra.mxu0 0.0
        %569 = vmatpush.xpose.msra.mxu0 0.0
        %570 = vmatpush.xpose.msra.mxu0 0.0
        %571 = vmatpush.xpose.msra.mxu0 0.0
        %572 = vmatpush.xpose.msra.mxu0 0.0
        %573 = vmatpush.xpose.msra.mxu0 0.0
        %574 = vmatpush.xpose.msra.mxu0 0.0
        %575 = vmatpush.xpose.msra.mxu0 0.0
        %576 = vmatpush.xpose.msra.mxu0 0.0
        %577 = vmatpush.xpose.msra.mxu0 %v479
        %578 = vmatmul.f32.gmra.mxu0 %v440
        %v579 = vpop.f32.mrf.mxu0
        %v580 = vadd.f32 0.0, %v579
        %581 = vdwg.mxu0
        %582 = vmatpush.xpose.msra.mxu0 0.0
        %583 = vmatpush.xpose.msra.mxu0 0.0
        %584 = vmatpush.xpose.msra.mxu0 0.0
        %585 = vmatpush.xpose.msra.mxu0 0.0
        %586 = vmatpush.xpose.msra.mxu0 0.0
        %587 = vmatpush.xpose.msra.mxu0 0.0
        %588 = vmatpush.xpose.msra.mxu0 0.0
        %589 = vmatpush.xpose.msra.mxu0 0.0
        %590 = vmatpush.xpose.msra.mxu0 0.0
        %591 = vmatpush.xpose.msra.mxu0 0.0
        %592 = vmatpush.xpose.msra.mxu0 0.0
        %593 = vmatpush.xpose.msra.mxu0 0.0
        %594 = vmatpush.xpose.msra.mxu0 0.0
        %595 = vmatpush.xpose.msra.mxu0 0.0
        %596 = vmatpush.xpose.msra.mxu0 0.0
        %597 = vmatpush.xpose.msra.mxu0 %v481
        %598 = vmatmul.f32.gmra.mxu0 %v442
        %v599 = vpop.f32.mrf.mxu0
        %v600 = vadd.f32 0.0, %v599
        %601 = vdwg.mxu0
        %vm602 = vcmask 64512
        %v603 = vsel %vm602, %v540, -inf
        %604 = vmax.xlane.f32.xlu0 %v603
        %v605 = vpop.xlane.xlu0 %604
        %v606 = vsel %vm602, %v560, -inf
        %607 = vmax.xlane.f32.xlu0 %v606
        %v608 = vpop.xlane.xlu0 %607
        %v609 = vsel %vm602, %v580, -inf
        %610 = vmax.xlane.f32.xlu0 %v609
        %v611 = vpop.xlane.xlu0 %610
        %v612 = vsel %vm602, %v600, -inf
        %613 = vmax.xlane.f32.xlu0 %v612
        %v614 = vpop.xlane.xlu0 %613
        %v615 = vsub.f32 %v540, %v605
        %v616 = vsub.f32 %v560, %v608
        %v617 = vsub.f32 %v580, %v611
        %v618 = vsub.f32 %v600, %v614
        %v619 = vmul.f32 %v615, 1.442695
        %v620 = vpow.pop %v619
        %v621 = vmul.f32 %v616, 1.442695
        %v622 = vpow.pop %v621
        %v623 = vmul.f32 %v617, 1.442695
        %v624 = vpow.pop %v623
        %v625 = vmul.f32 %v618, 1.442695
        %v626 = vpow.pop %v625
        %v627 = vsel %vm602, %v620, 0.0
        %628 = vadd.xlane.f32.xlu0 %v627
        %v629 = vpop.xlane.xlu0 %628
        %v630 = vsel %vm602, %v622, 0.0
        %631 = vadd.xlane.f32.xlu0 %v630
        %v632 = vpop.xlane.xlu0 %631
        %v633 = vsel %vm602, %v624, 0.0
        %634 = vadd.xlane.f32.xlu0 %v633
        %v635 = vpop.xlane.xlu0 %634
        %v636 = vsel %vm602, %v626, 0.0
        %637 = vadd.xlane.f32.xlu0 %v636
        %v638 = vpop.xlane.xlu0 %637
        %v639 = vrcp.pop %v629
        %v640 = vrcp.pop %v632
        %v641 = vrcp.pop %v635
        %v642 = vrcp.pop %v638
        %v643 = vmul.f32 %v620, %v639
        %v644 = vmul.f32 %v622, %v640
        %v645 = vmul.f32 %v624, %v641
        %v646 = vmul.f32 %v626, %v642
        %v647 = vpack.c.bf16 %v643, %v643
        %v648 = vpack.c.bf16 %v644, %v644
        %v649 = vpack.c.bf16 %v645, %v645
        %v650 = vpack.c.bf16 %v646, %v646
        %v651 = vpack.c.bf16 %v513, %v513
        %v652 = vpack.c.bf16 %v515, %v515
        %v653 = vpack.c.bf16 %v518, %v518
        %v654 = vpack.c.bf16 %v520, %v520
        %v656 = vsel %vm602, %v647, 0
        %vm658 = vcmask 1043456
        %v660 = vsel %vm658, %v651, 0
        %662 = vmatpush.bf16.msra.mxu0 0
        %663 = vmatpush.bf16.msra.mxu0 0
        %664 = vmatpush.bf16.msra.mxu0 0
        %665 = vmatpush.bf16.msra.mxu0 0
        %666 = vmatpush.bf16.msra.mxu0 0
        %667 = vmatpush.bf16.msra.mxu0 0
        %668 = vmatpush.bf16.msra.mxu0 0
        %669 = vmatpush.bf16.msra.mxu0 %v660
        %670 = vmatmul.bf16.gmra.mxu0 %v656
        %v671 = vpop.f32.mrf.mxu0
        %v672 = vadd.f32 0.0, %v671
        %v673 = vpop.f32.mrf.mxu0
        %674 = vdwg.mxu0
        %v676 = vsel %vm602, %v648, 0
        %v679 = vsel %vm658, %v652, 0
        %681 = vmatpush.bf16.msra.mxu0 0
        %682 = vmatpush.bf16.msra.mxu0 0
        %683 = vmatpush.bf16.msra.mxu0 0
        %684 = vmatpush.bf16.msra.mxu0 0
        %685 = vmatpush.bf16.msra.mxu0 0
        %686 = vmatpush.bf16.msra.mxu0 0
        %687 = vmatpush.bf16.msra.mxu0 0
        %688 = vmatpush.bf16.msra.mxu0 %v679
        %689 = vmatmul.bf16.gmra.mxu0 %v676
        %v690 = vpop.f32.mrf.mxu0
        %v691 = vadd.f32 0.0, %v690
        %v692 = vpop.f32.mrf.mxu0
        %693 = vdwg.mxu0
        %v695 = vsel %vm602, %v649, 0
        %v698 = vsel %vm658, %v653, 0
        %700 = vmatpush.bf16.msra.mxu0 0
        %701 = vmatpush.bf16.msra.mxu0 0
        %702 = vmatpush.bf16.msra.mxu0 0
        %703 = vmatpush.bf16.msra.mxu0 0
        %704 = vmatpush.bf16.msra.mxu0 0
        %705 = vmatpush.bf16.msra.mxu0 0
        %706 = vmatpush.bf16.msra.mxu0 0
        %707 = vmatpush.bf16.msra.mxu0 %v698
        %708 = vmatmul.bf16.gmra.mxu0 %v695
        %v709 = vpop.f32.mrf.mxu0
        %v710 = vadd.f32 0.0, %v709
        %v711 = vpop.f32.mrf.mxu0
        %712 = vdwg.mxu0
        %v714 = vsel %vm602, %v650, 0
        %v717 = vsel %vm658, %v654, 0
        %719 = vmatpush.bf16.msra.mxu0 0
        %720 = vmatpush.bf16.msra.mxu0 0
        %721 = vmatpush.bf16.msra.mxu0 0
        %722 = vmatpush.bf16.msra.mxu0 0
        %723 = vmatpush.bf16.msra.mxu0 0
        %724 = vmatpush.bf16.msra.mxu0 0
        %725 = vmatpush.bf16.msra.mxu0 0
        %726 = vmatpush.bf16.msra.mxu0 %v717
        %727 = vmatmul.bf16.gmra.mxu0 %v714
        %v728 = vpop.f32.mrf.mxu0
        %v729 = vadd.f32 0.0, %v728
        %v730 = vpop.f32.mrf.mxu0
        %731 = vdwg.mxu0
        %s732 = sld [smem:[#allocation2]]
        %v733 = vstv %s732
        %v734 = vmul.f32 %v733, %v672
        %v735 = vmul.f32 %v733, %v691
        %v736 = vmul.f32 %v733, %v710
        %v737 = vmul.f32 %v733, %v729
        %v738 = vadd.f32 %v734, %v380
        %v739 = vadd.f32 %v735, %v381
        %v740 = vadd.f32 %v736, %v382
        %v741 = vadd.f32 %v737, %v383
        %742 = vst.msk [vmem:[%s376] sm:$0xff] %vm418, %v738
        %743 = vst.msk [vmem:[%s376 + $0x8] sm:$0xff] %vm418, %v739
        %744 = vst.msk [vmem:[%s376 + $0x10] sm:$0xff] %vm418, %v740
        %745 = vst.msk [vmem:[%s376 + $0x18] sm:$0xff] %vm418, %v741
        %s746 = sand.u32 %s209, 1
        %s747 = scalar_lea.sflag [#allocation5], %s746
        %s748 = sand.u32 %s209, 1
        %s749 = smul.addr %s748, 32
        %s750 = scalar_lea.vmem [#allocation11], %s749
        // Predicated region
        $region69: #{tpu_custom_call.1} parent=51 // pred_check
          %p751 = pneg %p219
        $region70: #{tpu_custom_call.1} parent=51 // pred_check_branch
          %753 = sbr.rel (%p751) target = $region72
        $region71: #{tpu_custom_call.1} parent=51 // pred_region
          %s754 = smul.u32 4, %s28
          %756 = vsyncadd %s747, 0
          %s757 = smul.addr %s754, 8
          %s758 = scalar_lea.hbm %s8, %s757
          %s759 = sshll.u32 %s750, 4
          %s760 = int_to_ptr.vmem [resolvable:$true] %s759
          %s761 = sshll.u32 %s758, 4
          %s762 = int_to_ptr.hbm [resolvable:$true] %s761
          %767 = dma.vmem_to_hbm [thread:$0]  %s760, 512, %s762, %s747, 128, 128, 8
        $region72: #{tpu_custom_call.1} parent=51 // pred_fallthru
          _
      $region52: #{tpu_custom_call.1} parent=5 // pred_fallthru
        _
      %p768 = scmp.le.s32.totalorder 2, %s23
      // Predicated region
      $region73: #{tpu_custom_call.1} parent=5 // pred_check
        %p769 = pneg %p768
      $region74: #{tpu_custom_call.1} parent=5 // pred_check_branch
        %771 = sbr.rel (%p769) target = $region76
      $region75: #{tpu_custom_call.1} parent=5 // pred_region
        %s772 = ssub.s32 %s23, 2
        // Predicated region
        $region77: #{tpu_custom_call.1} parent=75 // pred_check
          %p773 = pneg %p225
        $region78: #{tpu_custom_call.1} parent=75 // pred_check_branch
          %775 = sbr.rel (%p773) target = $region80
        $region79: #{tpu_custom_call.1} parent=75 // pred_region
          %s776 = sand.u32 %s210, 1
          %s777 = scalar_lea.sflag [#allocation5], %s776
          %s778 = sand.u32 %s210, 1
          %s779 = smul.addr %s778, 32
          %s780 = scalar_lea.vmem [#allocation11], %s779
          %782 = dma.done %s777, 512
        $region80: #{tpu_custom_call.1} parent=75 // pred_fallthru
          _
      $region76: #{tpu_custom_call.1} parent=5 // pred_fallthru
        _
    $region6: #{tpu_custom_call.1} parent=1 // loop_footer
      %s27 = sadd.s32 1, %s23
    $region7: #{tpu_custom_call.1} parent=1 // loop_footer_branch
      %22 = sbr.rel target = $region3
    $region8: #{tpu_custom_call.1} parent=1 // loop_exit
      _
    %783 = vsyncpa [#allocation4], 1
    %s784 = scalar_lea.sflag [#allocation4], 1
    %785 = vsyncpa %s784, 1
    %786 = vsyncpa [#allocation7], 1
    %787 = vsyncpa [#allocation10], 1
    %788 = vsyncpa [#allocation5], 1
    %s789 = scalar_lea.sflag [#allocation5], 1
    %790 = vsyncpa %s789, 1

</llo_original>
